<compile_context>
chip_gen: v7x
topology: tpu7x:2x2x1
jax: 0.10.0
libtpu: 0.0.40
codegen_flags: <defaults>
</compile_context>

<pallas_src>
import functools

import jax
import jax.numpy as jnp
from jax.experimental import pallas as pl
from jax.experimental.pallas import tpu as pltpu

TP_MAX = 8192  # max priors per tile (lane axis)


def _round_up(x, m):
    return ((x + m - 1) // m) * m


def _cdiv(a, b):
    return -(-a // b)


# ----------------------------------------------------------------------------
# Pallas kernel: all per-prior loss terms, prior-on-lane layout, one merged input slab
# ----------------------------------------------------------------------------
def _multibox_terms_kernel(x_ref, out_ref, *, num_classes):
    C = num_classes
    x = x_ref[0]                                # (39 + C, tp) merged [preds | targets] slab
    TO = 19 + C                                 # row offset of the target block

    conf_t = x[TO + 19:TO + 20, :]              # (1, tp) float labels (exact small ints)
    pos = conf_t != 0.0                         # loc / conf positives (label != 0, incl. -1)
    pos1 = conf_t > 0.0                         # landm / visibility positives
    posf = pos.astype(jnp.float32)
    pos1f = pos1.astype(jnp.float32)

    # ---- smooth-L1 on loc(4) + landm(10): one contiguous (14, tp) slab ----
    d = x[0:14, :] - x[TO:TO + 14, :]
    ad = jnp.abs(d)
    sl = jnp.where(ad < 1.0, 0.5 * d * d, ad - 0.5)
    loc_pp = jnp.sum(sl[0:4, :], axis=0, keepdims=True) * posf           # (1, tp)
    lm = sl[4:14, :] * (x[TO + 4:TO + 14, :] != -1.0).astype(jnp.float32)
    lm_sum = jnp.sum(lm, axis=0, keepdims=True) * pos1f                  # (1, tp)
    # (lm_mean == lm_sum / 10; ordering by the sum gives the identical top-k in the glue)

    # ---- visibility: numerically-stable BCE-with-logits, masked by pos1 ----
    vp = x[14:19, :]
    vt = x[TO + 14:TO + 19, :]
    bce = jnp.maximum(vp, 0.0) - vp * vt + jnp.log(1.0 + jnp.exp(-jnp.abs(vp)))
    vis_pp = jnp.sum(bce, axis=0, keepdims=True) * pos1f                 # (1, tp)

    # ---- confidence cross entropy: slab-form LSE over the class axis ----
    conf = x[19:19 + C, :]                                               # (C, tp)
    m = jnp.max(conf, axis=0, keepdims=True)
    lse = jnp.log(jnp.sum(jnp.exp(conf - m), axis=0, keepdims=True)) + m
    # The reference sets conf_t[pos] = 1 BEFORE the gather, so the target logit is class 1 for
    # every prior with label != 0 (including -1) and class 0 otherwise -> a simple select.
    c_at_t = jnp.where(pos, x[20:21, :], x[19:20, :])
    ce = lse - c_at_t                                                    # (1, tp)
    # The reference's global-max log_sum_exp equals the row-stable LSE above, so the hard-negative
    # mining score is simply where(pos, 0, ce); emit it here so the glue never recomputes it.
    hm = jnp.where(pos, 0.0, ce)

    # ---- direct lane-dense row writes into the 8-row output (no sublane concat) ----
    out_ref[0, 0:1, :] = ce
    out_ref[0, 1:2, :] = hm
    out_ref[0, 2:3, :] = lm_sum
    out_ref[0, 3:4, :] = loc_pp
    out_ref[0, 4:5, :] = vis_pp
    out_ref[0, 5:8, :] = jnp.zeros((3, x.shape[1]), jnp.float32)


def _multibox_terms(slab, tp, num_classes):
    B, Fp, Pp = slab.shape
    return pl.pallas_call(
        functools.partial(_multibox_terms_kernel, num_classes=num_classes),
        out_shape=jax.ShapeDtypeStruct((B, 8, Pp), jnp.float32),
        grid=(B, Pp // tp),
        in_specs=[pl.BlockSpec((1, Fp, tp), lambda i, j: (i, 0, j))],
        out_specs=pl.BlockSpec((1, 8, tp), lambda i, j: (i, 0, j)),
        compiler_params=pltpu.CompilerParams(
            dimension_semantics=("parallel", "parallel")),
    )(slab)


# ----------------------------------------------------------------------------
# Plain-JAX glue: GT<->prior matching (box_utils.match / encode / encode_landm)
# ----------------------------------------------------------------------------
def _point_form(priors):
    return jnp.concatenate([priors[:, :2] - priors[:, 2:] / 2.0,
                            priors[:, :2] + priors[:, 2:] / 2.0], axis=1)


def _jaccard(box_a, box_b):
    max_xy = jnp.minimum(box_a[:, None, 2:], box_b[None, :, 2:])
    min_xy = jnp.maximum(box_a[:, None, :2], box_b[None, :, :2])
    wh = jnp.maximum(max_xy - min_xy, 0.0)
    inter = wh[..., 0] * wh[..., 1]
    area_a = ((box_a[:, 2] - box_a[:, 0]) * (box_a[:, 3] - box_a[:, 1]))[:, None]
    area_b = ((box_b[:, 2] - box_b[:, 0]) * (box_b[:, 3] - box_b[:, 1]))[None, :]
    return inter / (area_a + area_b - inter)


def _encode(matched, priors, variances):
    g_cxcy = (matched[:, :2] + matched[:, 2:]) / 2.0 - priors[:, :2]
    g_cxcy = g_cxcy / (variances[0] * priors[:, 2:])
    g_wh = (matched[:, 2:] - matched[:, :2]) / priors[:, 2:]
    g_wh = jnp.log(g_wh) / variances[1]
    return jnp.concatenate([g_cxcy, g_wh], axis=1)


def _encode_landm(matched, priors, variances):
    m = matched.reshape(-1, 5, 2)
    g = (m - priors[:, None, :2]) / (variances[0] * priors[:, None, 2:])
    return g.reshape(-1, 10)


def _match_one(target, priors, threshold, variances):
    # TODO(synk): the exact extended `match` (angle_t / visible_t handling, empty-GT early exit)
    # lives in an external box_utils module not included in the provided source; this follows the
    # standard RetinaFace matching (unconditional best_truth_idx fill, valid-GT-gated overlap fill)
    # with the natural extension (gather angle / visibility by the best-matching GT).
    truths = target[:, :4]
    landms = target[:, 4:14]
    labels = target[:, 14]
    angles = target[:, 15]
    visible = target[:, 16:21]

    overlaps = _jaccard(truths, _point_form(priors))           # (n_obj, P)
    best_prior_overlap = jnp.max(overlaps, axis=1)
    best_prior_idx = jnp.argmax(overlaps, axis=1)
    valid_gt = best_prior_overlap >= 0.2
    best_truth_overlap = jnp.max(overlaps, axis=0)             # (P,)
    best_truth_idx = jnp.argmax(overlaps, axis=0)
    # index_fill_: every valid GT keeps its best prior (overlap set to 2);
    # the best_truth_idx fill is unconditional, as in the reference loop.
    fill = jnp.where(valid_gt, 2.0, best_truth_overlap[best_prior_idx])
    best_truth_overlap = best_truth_overlap.at[best_prior_idx].set(fill)
    best_truth_idx = best_truth_idx.at[best_prior_idx].set(jnp.arange(truths.shape[0]))

    matches = truths[best_truth_idx]
    conf = labels[best_truth_idx].astype(jnp.int32)
    conf = jnp.where(best_truth_overlap < threshold, 0, conf)
    loc = _encode(matches, priors, variances)
    landm = _encode_landm(landms[best_truth_idx], priors, variances)
    angle = angles[best_truth_idx].astype(jnp.int32)
    vis = visible[best_truth_idx]
    return loc, conf, landm, angle, vis


# ----------------------------------------------------------------------------
# MultiBoxLoss.forward
# ----------------------------------------------------------------------------
def multibox_loss_forward(loc_data, conf_data, landm_data, visible_data,
                          priors, targets,
                          overlap_thresh=0.35, negpos_ratio=7,
                          variances=(0.1, 0.2)):
    B, P, _ = loc_data.shape
    C = conf_data.shape[-1]

    loc_t, conf_t, landm_t, angle_t, visible_t = jax.vmap(
        lambda t: _match_one(t, priors, overlap_thresh, variances))(targets)
    # NOTE: mask_angle = angle_t > 60 and the ang_* masks are computed in the original forward but
    # never used in the returned losses; the Wing submodule is also never called in forward.
    del angle_t

    # ---- tile selection: as few / as large tiles as possible, but >= 2 total grid steps ----
    n_tiles = max(1, _cdiv(P, TP_MAX))
    tp = _round_up(_cdiv(P, n_tiles), 128)
    while B * n_tiles < 2 and tp > 128:            # keep both v7x TensorCores busy
        n_tiles *= 2
        tp = _round_up(_cdiv(P, n_tiles), 128)
    Pp = n_tiles * tp
    pad = Pp - P

    # ---- one merged lane-dense prior-on-lane slab: [preds(19+C) | targets(20)] ----
    slab = jnp.concatenate(
        [loc_data, landm_data, visible_data, conf_data,
         loc_t, landm_t, visible_t, conf_t[..., None].astype(jnp.float32)], axis=-1)
    slab = jnp.transpose(slab, (0, 2, 1)).astype(jnp.float32)           # (B, 39+C, P)
    if pad:
        slab = jnp.pad(slab, ((0, 0), (0, 0), (0, pad)))                # conf_t pads to 0 (negative)

    out = _multibox_terms(slab, tp, C)                                  # (B, 8, Pp)
    ce = out[:, 0, :]
    hm = out[:, 1, :]
    lm_sum = out[:, 2, :]
    loc_pp = out[:, 3, :]
    vis_pp = out[:, 4, :]

    conf_t_p = jnp.pad(conf_t, ((0, 0), (0, pad))) if pad else conf_t
    pos = conf_t_p != 0
    pos1 = conf_t_p > 0
    valid = (jnp.arange(Pp) < P)[None, :]

    num_pos = jnp.sum(pos.astype(jnp.int32), axis=1, keepdims=True)
    N = jnp.maximum(jnp.sum(num_pos).astype(jnp.float32), 1.0)
    n_pos1 = jnp.sum(pos1.astype(jnp.int32))
    N1 = jnp.maximum(n_pos1.astype(jnp.float32), 1.0)

    # ---- localization & visibility: masked per-prior sums come straight from the kernel ----
    loss_l = jnp.sum(loc_pp) / N
    loss_vis = jnp.sum(vis_pp) / N1

    # ---- landmark loss: top-k (k = 0.5 * #positive rows) by per-row masked loss ----
    size = (0.5 * n_pos1.astype(jnp.float32)).astype(jnp.int32)
    key = jnp.where(pos1, lm_sum, -jnp.inf).reshape(-1)      # non-positive rows rank last
    sorted_desc = -jnp.sort(-key)                            # plain-JAX glue: no Pallas TPU sort
    take = jnp.arange(B * Pp) < size
    loss_landm = jnp.sum(jnp.where(take, sorted_desc, 0.0))
    loss_landm = loss_landm / size.astype(jnp.float32)       # reference divides by the unclamped size

    # ---- hard negative mining (rank per row: one argsort + scatter, plain JAX) ----
    score = jnp.where(valid, hm, -1.0)                       # padded priors rank after everything
    order = jnp.argsort(-score, axis=1)
    iota = jnp.broadcast_to(jnp.arange(Pp, dtype=jnp.int32)[None, :], (B, Pp))
    idx_rank = jnp.zeros((B, Pp), jnp.int32).at[jnp.arange(B)[:, None], order].set(iota)
    num_neg = jnp.minimum(negpos_ratio * num_pos, P - 1)
    neg = idx_rank < num_neg
    sel = (pos | neg) & valid
    loss_c = jnp.sum(jnp.where(sel, ce, 0.0)) / N

    return loss_l, loss_c, loss_landm, loss_vis


# ----------------------------------------------------------------------------
if __name__ == "__main__":
    key = jax.random.PRNGKey(0)
    B = 2
    num_classes = 2
    fmap = 16
    P = fmap * fmap                                 # 256 priors

    # anchor grid (cx, cy, w, h), normalized coords
    cxy = (jnp.arange(fmap, dtype=jnp.float32) + 0.5) / fmap
    gx, gy = jnp.meshgrid(cxy, cxy, indexing="xy")
    priors = jnp.stack([gx.reshape(-1), gy.reshape(-1),
                        jnp.full((P,), 0.1, jnp.float32),
                        jnp.full((P,), 0.1, jnp.float32)], axis=1)

    k1, k2, k3, k4, k5, k6 = jax.random.split(key, 6)
    loc_data = 0.1 * jax.random.normal(k1, (B, P, 4), jnp.float32)
    conf_data = jax.random.normal(k2, (B, P, num_classes), jnp.float32)
    landm_data = 0.1 * jax.random.normal(k3, (B, P, 10), jnp.float32)
    visible_data = jax.random.normal(k4, (B, P, 5), jnp.float32)

    # ground truth: 3 objects per image, 21 columns = box(4)+landm(10)+label(1)+angle(1)+visible(5)
    n_obj = 3
    centers = jnp.array([[0.25, 0.25], [0.55, 0.60], [0.80, 0.30]], jnp.float32)
    half = 0.08
    boxes = jnp.concatenate([centers - half, centers + half], axis=1)
    gt_landms = jax.random.uniform(k5, (n_obj, 10), jnp.float32)
    labels = jnp.ones((n_obj, 1), jnp.float32)
    angles = jnp.array([[30.0], [75.0], [45.0]], jnp.float32)
    visible = (jax.random.uniform(k6, (n_obj, 5)) > 0.5).astype(jnp.float32)
    tgt_one = jnp.concatenate([boxes, gt_landms, labels, angles, visible], axis=1)
    tgt_two = tgt_one.at[:, :4].add(0.05)
    targets = jnp.stack([tgt_one, tgt_two], axis=0)            # (B, 3, 21)

    # jit the whole forward so the slab pack/transpose/pad fuses with the kernel's producers
    loss_fn = jax.jit(multibox_loss_forward)
    out = loss_fn(loc_data, conf_data, landm_data, visible_data, priors, targets)
    out = jax.block_until_ready(out)
    print("KERNEL_OK")
</pallas_src>

<mosaic_0001>
module attributes {stable_mosaic.version = 11 : i64} {
  func.func @_multibox_terms_kernel(%arg0: i32, %arg1: i32, %arg2: memref<1x41x256xf32, #tpu.memory_space<vmem>>, %arg3: memref<1x8x256xf32, #tpu.memory_space<vmem>>) attributes {dimension_semantics = [#tpu.dimension_semantics<parallel>, #tpu.dimension_semantics<parallel>], iteration_bounds = array<i64: 2, 1>, scalar_prefetch = 0 : i64, scratch_operands = 0 : i64, tpu.core_type = #tpu.core_type<tc>, window_params = [{transform_indices = @transform_0, window_bounds = array<i64: 1, 41, 256>}, {transform_indices = @transform_1, window_bounds = array<i64: 1, 8, 256>}]} {
    %c0 = arith.constant 0 : index
    %c0_0 = arith.constant 0 : index
    %c0_1 = arith.constant 0 : index
    %0 = vector.load %arg2[%c0, %c0_0, %c0_1] : memref<1x41x256xf32, #tpu.memory_space<vmem>>, vector<1x41x256xf32>
    %1 = vector.shape_cast %0 : vector<1x41x256xf32> to vector<41x256xf32>
    %2 = vector.extract_strided_slice %1 {offsets = [40, 0], sizes = [1, 256], strides = [1, 1]} : vector<41x256xf32> to vector<1x256xf32>
    %cst = arith.constant 0.000000e+00 : f32
    %3 = vector.broadcast %cst : f32 to vector<1x256xf32>
    %4 = arith.cmpf one, %2, %3 : vector<1x256xf32>
    %cst_2 = arith.constant 0.000000e+00 : f32
    %5 = vector.broadcast %cst_2 : f32 to vector<1x256xf32>
    %6 = arith.cmpf ogt, %2, %5 : vector<1x256xf32>
    %7 = arith.extui %4 : vector<1x256xi1> to vector<1x256xi32>
    %8 = arith.sitofp %7 : vector<1x256xi32> to vector<1x256xf32>
    %9 = arith.extui %6 : vector<1x256xi1> to vector<1x256xi32>
    %10 = arith.sitofp %9 : vector<1x256xi32> to vector<1x256xf32>
    %11 = vector.extract_strided_slice %1 {offsets = [0, 0], sizes = [14, 256], strides = [1, 1]} : vector<41x256xf32> to vector<14x256xf32>
    %12 = vector.extract_strided_slice %1 {offsets = [21, 0], sizes = [14, 256], strides = [1, 1]} : vector<41x256xf32> to vector<14x256xf32>
    %13 = arith.subf %11, %12 : vector<14x256xf32>
    %14 = math.absf %13 : vector<14x256xf32>
    %cst_3 = arith.constant 1.000000e+00 : f32
    %15 = vector.broadcast %cst_3 : f32 to vector<14x256xf32>
    %16 = arith.cmpf olt, %14, %15 : vector<14x256xf32>
    %cst_4 = arith.constant 5.000000e-01 : f32
    %17 = vector.broadcast %cst_4 : f32 to vector<14x256xf32>
    %18 = arith.mulf %17, %13 : vector<14x256xf32>
    %19 = arith.mulf %18, %13 : vector<14x256xf32>
    %cst_5 = arith.constant 5.000000e-01 : f32
    %20 = vector.broadcast %cst_5 : f32 to vector<14x256xf32>
    %21 = arith.subf %14, %20 : vector<14x256xf32>
    %22 = arith.select %16, %19, %21 : vector<14x256xi1>, vector<14x256xf32>
    %23 = vector.extract_strided_slice %22 {offsets = [0, 0], sizes = [4, 256], strides = [1, 1]} : vector<14x256xf32> to vector<4x256xf32>
    %cst_6 = arith.constant dense<0.000000e+00> : vector<256xf32>
    %24 = vector.multi_reduction <add>, %23, %cst_6 [0] : vector<4x256xf32> to vector<256xf32>
    %25 = vector.shape_cast %24 : vector<256xf32> to vector<1x256xf32>
    %26 = arith.mulf %25, %8 : vector<1x256xf32>
    %27 = vector.extract_strided_slice %22 {offsets = [4, 0], sizes = [10, 256], strides = [1, 1]} : vector<14x256xf32> to vector<10x256xf32>
    %28 = vector.extract_strided_slice %1 {offsets = [25, 0], sizes = [10, 256], strides = [1, 1]} : vector<41x256xf32> to vector<10x256xf32>
    %cst_7 = arith.constant -1.000000e+00 : f32
    %29 = vector.broadcast %cst_7 : f32 to vector<10x256xf32>
    %30 = arith.cmpf one, %28, %29 : vector<10x256xf32>
    %31 = arith.extui %30 : vector<10x256xi1> to vector<10x256xi32>
    %32 = arith.sitofp %31 : vector<10x256xi32> to vector<10x256xf32>
    %33 = arith.mulf %27, %32 : vector<10x256xf32>
    %cst_8 = arith.constant dense<0.000000e+00> : vector<256xf32>
    %34 = vector.multi_reduction <add>, %33, %cst_8 [0] : vector<10x256xf32> to vector<256xf32>
    %35 = vector.shape_cast %34 : vector<256xf32> to vector<1x256xf32>
    %36 = arith.mulf %35, %10 : vector<1x256xf32>
    %37 = vector.extract_strided_slice %1 {offsets = [14, 0], sizes = [5, 256], strides = [1, 1]} : vector<41x256xf32> to vector<5x256xf32>
    %38 = vector.extract_strided_slice %1 {offsets = [35, 0], sizes = [5, 256], strides = [1, 1]} : vector<41x256xf32> to vector<5x256xf32>
    %cst_9 = arith.constant 0.000000e+00 : f32
    %39 = vector.broadcast %cst_9 : f32 to vector<5x256xf32>
    %40 = arith.maximumf %37, %39 : vector<5x256xf32>
    %41 = arith.mulf %37, %38 : vector<5x256xf32>
    %42 = arith.subf %40, %41 : vector<5x256xf32>
    %43 = math.absf %37 : vector<5x256xf32>
    %cst_10 = arith.constant 0.000000e+00 : f32
    %44 = vector.broadcast %cst_10 : f32 to vector<5x256xf32>
    %45 = arith.subf %44, %43 : vector<5x256xf32>
    %46 = math.exp %45 : vector<5x256xf32>
    %cst_11 = arith.constant 1.000000e+00 : f32
    %47 = vector.broadcast %cst_11 : f32 to vector<5x256xf32>
    %48 = arith.addf %47, %46 : vector<5x256xf32>
    %49 = math.log %48 : vector<5x256xf32>
    %50 = arith.addf %42, %49 : vector<5x256xf32>
    %cst_12 = arith.constant dense<0.000000e+00> : vector<256xf32>
    %51 = vector.multi_reduction <add>, %50, %cst_12 [0] : vector<5x256xf32> to vector<256xf32>
    %52 = vector.shape_cast %51 : vector<256xf32> to vector<1x256xf32>
    %53 = arith.mulf %52, %10 : vector<1x256xf32>
    %54 = vector.extract_strided_slice %1 {offsets = [19, 0], sizes = [2, 256], strides = [1, 1]} : vector<41x256xf32> to vector<2x256xf32>
    %cst_13 = arith.constant dense<0xFF800000> : vector<256xf32>
    %55 = vector.multi_reduction <maximumf>, %54, %cst_13 [0] : vector<2x256xf32> to vector<256xf32>
    %56 = vector.shape_cast %55 : vector<256xf32> to vector<1x256xf32>
    %57 = vector.broadcast %56 : vector<1x256xf32> to vector<2x256xf32>
    %58 = arith.subf %54, %57 : vector<2x256xf32>
    %59 = math.exp %58 : vector<2x256xf32>
    %cst_14 = arith.constant dense<0.000000e+00> : vector<256xf32>
    %60 = vector.multi_reduction <add>, %59, %cst_14 [0] : vector<2x256xf32> to vector<256xf32>
    %61 = vector.shape_cast %60 : vector<256xf32> to vector<1x256xf32>
    %62 = math.log %61 : vector<1x256xf32>
    %63 = arith.addf %62, %56 : vector<1x256xf32>
    %64 = vector.extract_strided_slice %1 {offsets = [20, 0], sizes = [1, 256], strides = [1, 1]} : vector<41x256xf32> to vector<1x256xf32>
    %65 = vector.extract_strided_slice %1 {offsets = [19, 0], sizes = [1, 256], strides = [1, 1]} : vector<41x256xf32> to vector<1x256xf32>
    %66 = arith.select %4, %64, %65 : vector<1x256xi1>, vector<1x256xf32>
    %67 = arith.subf %63, %66 : vector<1x256xf32>
    %cst_15 = arith.constant 0.000000e+00 : f32
    %68 = vector.broadcast %cst_15 : f32 to vector<1x256xf32>
    %69 = arith.select %4, %68, %67 : vector<1x256xi1>, vector<1x256xf32>
    %c0_16 = arith.constant 0 : index
    %c0_17 = arith.constant 0 : index
    %c0_18 = arith.constant 0 : index
    %70 = vector.load %arg3[%c0_16, %c0_17, %c0_18] : memref<1x8x256xf32, #tpu.memory_space<vmem>>, vector<1x1x256xf32>
    %71 = vector.shape_cast %70 : vector<1x1x256xf32> to vector<1x256xf32>
    %72 = vector.shape_cast %67 : vector<1x256xf32> to vector<1x1x256xf32>
    tpu.vector_store %arg3[%c0_16, %c0_17, %c0_18], %72 {strides = array<i32>} : memref<1x8x256xf32, #tpu.memory_space<vmem>>, vector<1x1x256xf32>,
    %c0_19 = arith.constant 0 : index
    %c1 = arith.constant 1 : index
    %c0_20 = arith.constant 0 : index
    %73 = vector.load %arg3[%c0_19, %c1, %c0_20] : memref<1x8x256xf32, #tpu.memory_space<vmem>>, vector<1x1x256xf32>
    %74 = vector.shape_cast %73 : vector<1x1x256xf32> to vector<1x256xf32>
    %75 = vector.shape_cast %69 : vector<1x256xf32> to vector<1x1x256xf32>
    tpu.vector_store %arg3[%c0_19, %c1, %c0_20], %75 {strides = array<i32>} : memref<1x8x256xf32, #tpu.memory_space<vmem>>, vector<1x1x256xf32>,
    %c0_21 = arith.constant 0 : index
    %c2 = arith.constant 2 : index
    %c0_22 = arith.constant 0 : index
    %76 = vector.load %arg3[%c0_21, %c2, %c0_22] : memref<1x8x256xf32, #tpu.memory_space<vmem>>, vector<1x1x256xf32>
    %77 = vector.shape_cast %76 : vector<1x1x256xf32> to vector<1x256xf32>
    %78 = vector.shape_cast %36 : vector<1x256xf32> to vector<1x1x256xf32>
    tpu.vector_store %arg3[%c0_21, %c2, %c0_22], %78 {strides = array<i32>} : memref<1x8x256xf32, #tpu.memory_space<vmem>>, vector<1x1x256xf32>,
    %c0_23 = arith.constant 0 : index
    %c3 = arith.constant 3 : index
    %c0_24 = arith.constant 0 : index
    %79 = vector.load %arg3[%c0_23, %c3, %c0_24] : memref<1x8x256xf32, #tpu.memory_space<vmem>>, vector<1x1x256xf32>
    %80 = vector.shape_cast %79 : vector<1x1x256xf32> to vector<1x256xf32>
    %81 = vector.shape_cast %26 : vector<1x256xf32> to vector<1x1x256xf32>
    tpu.vector_store %arg3[%c0_23, %c3, %c0_24], %81 {strides = array<i32>} : memref<1x8x256xf32, #tpu.memory_space<vmem>>, vector<1x1x256xf32>,
    %c0_25 = arith.constant 0 : index
    %c4 = arith.constant 4 : index
    %c0_26 = arith.constant 0 : index
    %82 = vector.load %arg3[%c0_25, %c4, %c0_26] : memref<1x8x256xf32, #tpu.memory_space<vmem>>, vector<1x1x256xf32>
    %83 = vector.shape_cast %82 : vector<1x1x256xf32> to vector<1x256xf32>
    %84 = vector.shape_cast %53 : vector<1x256xf32> to vector<1x1x256xf32>
    tpu.vector_store %arg3[%c0_25, %c4, %c0_26], %84 {strides = array<i32>} : memref<1x8x256xf32, #tpu.memory_space<vmem>>, vector<1x1x256xf32>,
    %cst_27 = arith.constant 0.000000e+00 : f32
    %85 = vector.broadcast %cst_27 : f32 to vector<3x256xf32>
    %c0_28 = arith.constant 0 : index
    %c5 = arith.constant 5 : index
    %c0_29 = arith.constant 0 : index
    %86 = vector.load %arg3[%c0_28, %c5, %c0_29] : memref<1x8x256xf32, #tpu.memory_space<vmem>>, vector<1x3x256xf32>
    %87 = vector.shape_cast %86 : vector<1x3x256xf32> to vector<3x256xf32>
    %88 = vector.shape_cast %85 : vector<3x256xf32> to vector<1x3x256xf32>
    tpu.vector_store %arg3[%c0_28, %c5, %c0_29], %88 {strides = array<i32>} : memref<1x8x256xf32, #tpu.memory_space<vmem>>, vector<1x3x256xf32>,
    return
  }
  func.func @transform_0(%arg0: i32, %arg1: i32) -> (i32, i32, i32) {
    %c0_i32 = arith.constant 0 : i32
    %c0_i32_0 = arith.constant 0 : i32
    return %arg0, %c0_i32, %arg1 : i32, i32, i32
  }
  func.func @transform_1(%arg0: i32, %arg1: i32) -> (i32, i32, i32) {
    %c0_i32 = arith.constant 0 : i32
    %c0_i32_0 = arith.constant 0 : i32
    return %arg0, %c0_i32, %arg1 : i32, i32, i32
  }
}

</mosaic_0001>

<llo_original>
// kernel: multibox_loss_forward.1
$region0: #{multibox_loss_forward.1}
  #allocation0 [shape = 'u32[]', space=smem, size = 0x4, offset = 0x4, fixed_abs, tag = 'smem constant byte address 0x4 - core index']
  #allocation1 [shape = 'u32[144,128]{1,0:T(1,128)}', space=vmem, size = 0x12000, scoped, tag = 'internal scratch']
  %s0 = inlined_call_operand.vmem [shape: f32[2,41,256], index: 0, kind: input, shape index: {}]
  %s1 = inlined_call_operand.vmem [shape: f32[2,8,256], index: 1, kind: output, shape index: {}]
  %s2 = sld [smem:[#allocation0]]
  $region37: #{multibox_loss_forward.1} parent=0
    _
  %s4 = ssub.s32 1, %s2
  %s5 = scalar_select 0, %s4, %s2
  loop: start=0, step=1, limit=4
  $region2: #{multibox_loss_forward.1} parent=0 // loop_pre_header
    _
  $region3: #{multibox_loss_forward.1} parent=0 // loop_header
    %s7 = sphi 0, %s11
    %p8 = scmp.ge.s32.totalorder %s7, 4
    %s14 = sphi 0, %s26
    %s15 = sphi 0, %s22
    %s16 = sphi 0, %s14
    %s17 = sphi 0, %s15
    %s18 = sphi 0, %s16
    %s19 = sphi 0, %s17
    %s31 = sphi 0, %s33
    %s34 = sphi 0, %s31
    %s35 = sphi 0, %s34
    %s51 = sphi 0, %s35
    %s59 = sphi 0, %s61
    %s62 = sphi 0, %s59
    %s63 = sphi 0, %s62
    %s79 = sphi 0, %s63
  $region4: #{multibox_loss_forward.1} parent=0 // loop_header_branch
    %10 = sbr.rel (%p8) target = $region8
  $region5: #{multibox_loss_forward.1} parent=0 // loop_body
    %s12 = ssub.s32 %s7, 1
    %s13 = ssub.s32 %s7, 2
    %s20 = sadd.s32 1, %s15
    %p21 = scmp.ge.s32.totalorder %s20, 1
    %s22 = scalar_select %p21, 0, %s20
    %s23 = sadd.s32 1, %s14
    %s24 = scalar_select %p21, %s23, %s14
    %p25 = scmp.ge.s32.totalorder %s24, 2
    %s26 = scalar_select %p25, 0, %s24
    %s27 = ssub.s32 %s14, %s26
    %s28 = ssub.s32 %s15, %s22
    %s29 = sor.u32 %s27, %s28
    %p30 = scmp.eq.s32.totalorder %s29, 0
    %s32 = sadd.s32 %s31, 1
    %s33 = scalar_select %p30, %s31, %s32
    %p36 = pneg %p30
    %p37 = scmp.eq.s32.totalorder %s7, 1
    %p38 = por %p36, %p37
    %p39 = scmp.ne.s32.totalorder %s31, %s34
    %p40 = scmp.eq.s32.totalorder %s7, 0
    %p41 = por %p39, %p40
    %p42 = scmp.ne.s32.totalorder %s31, %s34
    %p43 = scmp.eq.s32.totalorder %s12, 1
    %p44 = por %p42, %p43
    %p45 = scmp.ne.s32.totalorder %s34, %s35
    %p46 = scmp.eq.s32.totalorder %s12, 0
    %p47 = por %p45, %p46
    %p48 = scmp.ne.s32.totalorder %s34, %s35
    %p49 = scmp.eq.s32.totalorder %s13, 1
    %p50 = por %p48, %p49
    %p52 = scmp.ne.s32.totalorder %s35, %s51
    %p53 = scmp.eq.s32.totalorder %s13, 0
    %p54 = por %p52, %p53
    %s55 = ssub.s32 %s14, %s26
    %s56 = ssub.s32 %s15, %s22
    %s57 = sor.u32 %s55, %s56
    %p58 = scmp.eq.s32.totalorder %s57, 0
    %s60 = sadd.s32 %s59, 1
    %s61 = scalar_select %p58, %s59, %s60
    %p64 = pneg %p58
    %p65 = scmp.eq.s32.totalorder %s7, 1
    %p66 = por %p64, %p65
    %p67 = scmp.ne.s32.totalorder %s59, %s62
    %p68 = scmp.eq.s32.totalorder %s7, 0
    %p69 = por %p67, %p68
    %p70 = scmp.ne.s32.totalorder %s59, %s62
    %p71 = scmp.eq.s32.totalorder %s12, 1
    %p72 = por %p70, %p71
    %p73 = scmp.ne.s32.totalorder %s62, %s63
    %p74 = scmp.eq.s32.totalorder %s12, 0
    %p75 = por %p73, %p74
    %p76 = scmp.ne.s32.totalorder %s62, %s63
    %p77 = scmp.eq.s32.totalorder %s13, 1
    %p78 = por %p76, %p77
    %p80 = scmp.ne.s32.totalorder %s63, %s79
    %p81 = scmp.eq.s32.totalorder %s13, 0
    %p82 = por %p80, %p81
    %p83 = scmp.le.s32.totalorder 1, %s7
    %p84 = scmp.lt.s32.totalorder %s7, 3
    %p85 = pnand %p83, %p84
    %p86 = pneg %p85
    // Predicated region
    $region9: #{multibox_loss_forward.1} parent=5 // pred_check
      _
    $region10: #{multibox_loss_forward.1} parent=5 // pred_check_branch
      %88 = sbr.rel (%p85) target = $region12
    $region11: #{multibox_loss_forward.1} parent=5 // pred_region
      %s89 = ssub.s32 %s7, 1
    $region12: #{multibox_loss_forward.1} parent=5 // pred_fallthru
      _
    %p90 = scmp.lt.s32.totalorder %s7, 2
    // Predicated region
    $region13: #{multibox_loss_forward.1} parent=5 // pred_check
      %p91 = pneg %p90
    $region14: #{multibox_loss_forward.1} parent=5 // pred_check_branch
      %93 = sbr.rel (%p91) target = $region16
    $region15: #{multibox_loss_forward.1} parent=5 // pred_region
      // Predicated region
      $region17: #{multibox_loss_forward.1} parent=15 // pred_check
        %p94 = pneg %p41
      $region18: #{multibox_loss_forward.1} parent=15 // pred_check_branch
        %96 = sbr.rel (%p94) target = $region20
      $region19: #{multibox_loss_forward.1} parent=15 // pred_region
        %s97 = smul.u32 2, %s15
        %p98 = scmp.lt.s32.totalorder %s14, 1
        %s99 = scalar_select %p98, %s14, 1
        %p100 = scmp.lt.s32.totalorder %s97, 1
        %s101 = scalar_select %p100, %s97, 1
        %s102 = smul.addr %s99, 12
        %s103 = sadd.s32 %s101, %s102
        %s104 = smul.addr %s103, 8
        %s105 = scalar_lea.vmem %s0, %s104
        %s106 = smul.u32 2, %s15
      $region20: #{multibox_loss_forward.1} parent=15 // pred_fallthru
        _
    $region16: #{multibox_loss_forward.1} parent=5 // pred_fallthru
      _
    %p107 = scmp.le.s32.totalorder 1, %s7
    %p108 = scmp.lt.s32.totalorder %s7, 3
    %p109 = pnand %p107, %p108
    %p110 = pneg %p109
    // Predicated region
    $region21: #{multibox_loss_forward.1} parent=5 // pred_check
      _
    $region22: #{multibox_loss_forward.1} parent=5 // pred_check_branch
      %112 = sbr.rel (%p109) target = $region24
    $region23: #{multibox_loss_forward.1} parent=5 // pred_region
      %s113 = ssub.s32 %s7, 1
      %s114 = smul.u32 2, %s17
      %p115 = scmp.lt.s32.totalorder %s16, 1
      %s116 = scalar_select %p115, %s16, 1
      %p117 = scmp.lt.s32.totalorder %s114, 1
      %s118 = scalar_select %p117, %s114, 1
      %s119 = smul.addr %s116, 12
      %s120 = sadd.s32 %s118, %s119
      %s121 = smul.addr %s120, 8
      %s122 = scalar_lea.vmem %s0, %s121
      %p123 = pneg %p47
      %p124 = pneg %p44
      %p125 = pneg %p75
      %p126 = pneg %p72
      %s127 = smul.u32 2, %s17
      %p128 = scmp.lt.s32.totalorder %s16, 1
      %s129 = scalar_select %p128, %s16, 1
      %p130 = scmp.lt.s32.totalorder %s127, 1
      %s131 = scalar_select %p130, %s127, 1
      %s132 = smul.addr %s129, 2
      %s133 = sadd.s32 %s131, %s132
      %s134 = smul.addr %s133, 8
      %s135 = scalar_lea.vmem %s1, %s134
      %s136 = smul.u32 2, %s17
      %p137 = scmp.lt.s32.totalorder %s16, 1
      %s138 = scalar_select %p137, %s16, 1
      %p139 = scmp.lt.s32.totalorder %s136, 1
      %s140 = scalar_select %p139, %s136, 1
      %s141 = smul.addr %s138, 12
      %s142 = sadd.s32 %s140, %s141
      %s143 = smul.addr %s142, 8
      %s144 = scalar_lea.vmem %s0, %s143
      %s145 = smul.u32 2, %s17
      %s146 = smul.u32 2, %s17
      %p147 = scmp.lt.s32.totalorder %s16, 1
      %s148 = scalar_select %p147, %s16, 1
      %p149 = scmp.lt.s32.totalorder %s146, 1
      %s150 = scalar_select %p149, %s146, 1
      %s151 = smul.addr %s148, 2
      %s152 = sadd.s32 %s150, %s151
      %s153 = smul.addr %s152, 8
      %s154 = scalar_lea.vmem %s1, %s153
      %s155 = smul.u32 2, %s17
      %v156 = vld [vmem:[%s144] sm:$0xff]
      %v157 = vld [vmem:[%s144 + $0x8] sm:$0xff]
      %v158 = vld [vmem:[%s144 + $0x10] sm:$0xff]
      %v159 = vld [vmem:[%s144 + $0x18] sm:$0xff]
      %v160 = vld [vmem:[%s144 + $0x20] sm:$0xff]
      %v161 = vld [vmem:[%s144 + $0x28] sm:$0xff]
      %v162 = vld [vmem:[%s144 + $0x30] sm:$0xff]
      %v163 = vld [vmem:[%s144 + $0x38] sm:$0xff]
      %v164 = vld [vmem:[%s144 + $0x40] sm:$0xff]
      %v165 = vld [vmem:[%s144 + $0x48] sm:$0xff]
      %v166 = vld [vmem:[%s144 + $0x50] sm:$0x1]
      %v167 = vld [vmem:[%s144 + $0x58] sm:$0x1]
      %vm168 = vcmp.ne.f32.partialorder %v166, 0.0
      %vm169 = vcmp.ne.f32.partialorder %v167, 0.0
      %vm170 = vcmp.gt.f32.partialorder %v166, 0.0
      %vm171 = vcmp.gt.f32.partialorder %v167, 0.0
      %v172 = vsel %vm168, 1, 0
      %v173 = vsel %vm169, 1, 0
      %v174 = vcvt.s32.f32 %v172
      %v175 = vcvt.s32.f32 %v173
      %v176 = vsel %vm170, 1, 0
      %v177 = vsel %vm171, 1, 0
      %v178 = vcvt.s32.f32 %v176
      %v179 = vcvt.s32.f32 %v177
      %vm186 = vcmask 1042432
      %v187 = vrot.slane %v160, 5
      %v188 = vrot.slane %v162, 5
      %v189 = vsel %vm186, %v187, %v188
      %v190 = vrot.slane %v161, 5
      %v191 = vrot.slane %v163, 5
      %v192 = vsel %vm186, %v190, %v191
      %v193 = vrot.slane %v164, 5
      %v194 = vsel %vm186, %v188, %v193
      %v195 = vrot.slane %v165, 5
      %v196 = vsel %vm186, %v191, %v195
      %v201 = vsub.f32 %v156, %v189
      %v202 = vsub.f32 %v157, %v192
      %v203 = vsub.f32 %v158, %v194
      %v204 = vsub.f32 %v159, %v196
      %v205 = vand.u32 2147483647, %v201
      %v206 = vand.u32 2147483647, %v202
      %v207 = vand.u32 2147483647, %v203
      %v208 = vand.u32 2147483647, %v204
      %vm209 = vcmp.lt.f32.partialorder %v205, 1.0
      %vm210 = vcmp.lt.f32.partialorder %v206, 1.0
      %vm211 = vcmp.lt.f32.partialorder %v207, 1.0
      %vm212 = vcmp.lt.f32.partialorder %v208, 1.0
      %v213 = vmul.f32 %v201, 0.5
      %v214 = vmul.f32 %v202, 0.5
      %v215 = vmul.f32 %v203, 0.5
      %v216 = vmul.f32 %v204, 0.5
      %v217 = vmul.f32 %v213, %v201
      %v218 = vmul.f32 %v214, %v202
      %v219 = vmul.f32 %v215, %v203
      %v220 = vmul.f32 %v216, %v204
      %v221 = vsub.f32 %v205, 0.5
      %v222 = vsub.f32 %v206, 0.5
      %v223 = vsub.f32 %v207, 0.5
      %v224 = vsub.f32 %v208, 0.5
      %v225 = vsel %vm209, %v217, %v221
      %v226 = vsel %vm210, %v218, %v222
      %v227 = vsel %vm211, %v219, %v223
      %v228 = vsel %vm212, %v220, %v224
      %vm229 = vcmask 1043456
      %v230 = vsel %vm229, %v225, 0.0
      %v231 = vrot.slane %v230, 4
      %v232 = vadd.f32 %v230, %v231
      %v233 = vrot.slane %v232, 2
      %v234 = vadd.f32 %v232, %v233
      %v235 = vrot.slane %v234, 1
      %v236 = vadd.f32 %v234, %v235
      %v237 = vsel %vm229, %v226, 0.0
      %v238 = vrot.slane %v237, 4
      %v239 = vadd.f32 %v237, %v238
      %v240 = vrot.slane %v239, 2
      %v241 = vadd.f32 %v239, %v240
      %v242 = vrot.slane %v241, 1
      %v243 = vadd.f32 %v241, %v242
      %v244 = vmul.f32 %v236, %v174
      %v245 = vmul.f32 %v243, %v175
      %vm246 = vcmp.ne.f32.partialorder %v162, -1.0
      %vm247 = vcmp.ne.f32.partialorder %v163, -1.0
      %vm248 = vcmp.ne.f32.partialorder %v164, -1.0
      %vm249 = vcmp.ne.f32.partialorder %v165, -1.0
      %v250 = vsel %vm246, 1, 0
      %v251 = vsel %vm247, 1, 0
      %v252 = vsel %vm248, 1, 0
      %v253 = vsel %vm249, 1, 0
      %v254 = vcvt.s32.f32 %v250
      %v255 = vcvt.s32.f32 %v251
      %v256 = vcvt.s32.f32 %v252
      %v257 = vcvt.s32.f32 %v253
      %v262 = vrot.slane %v254, 5
      %v263 = vrot.slane %v255, 5
      %v264 = vrot.slane %v256, 5
      %v265 = vsel %vm186, %v262, %v264
      %v266 = vrot.slane %v257, 5
      %v267 = vsel %vm186, %v263, %v266
      %v272 = vmul.f32 %v225, %v262
      %v273 = vmul.f32 %v226, %v263
      %v274 = vmul.f32 %v227, %v265
      %v275 = vmul.f32 %v228, %v267
      %v280 = vrot.slane %v272, 4
      %v281 = vrot.slane %v274, 4
      %v282 = vsel %vm229, %v280, %v281
      %v283 = vrot.slane %v273, 4
      %v284 = vrot.slane %v275, 4
      %v285 = vsel %vm229, %v283, %v284
      %vm290 = vcmask 1041408
      %v291 = vsel %vm290, %v281, 0.0
      %v292 = vadd.f32 %v282, %v291
      %v293 = vrot.slane %v292, 4
      %v294 = vadd.f32 %v292, %v293
      %v295 = vrot.slane %v294, 2
      %v296 = vadd.f32 %v294, %v295
      %v297 = vrot.slane %v296, 1
      %v298 = vadd.f32 %v296, %v297
      %v299 = vsel %vm290, %v284, 0.0
      %v300 = vadd.f32 %v285, %v299
      %v301 = vrot.slane %v300, 4
      %v302 = vadd.f32 %v300, %v301
      %v303 = vrot.slane %v302, 2
      %v304 = vadd.f32 %v302, %v303
      %v305 = vrot.slane %v304, 1
      %v306 = vadd.f32 %v304, %v305
      %v307 = vmul.f32 %v298, %v178
      %v308 = vmul.f32 %v306, %v179
      %v309 = vmax.f32 %v158, 0.0
      %v310 = vmax.f32 %v159, 0.0
      %v311 = vmax.f32 %v160, 0.0
      %v312 = vmax.f32 %v161, 0.0
      %v315 = vmul.f32 %v158, %v193
      %v316 = vmul.f32 %v159, %v195
      %v317 = vmul.f32 %v160, %v193
      %v318 = vmul.f32 %v161, %v195
      %v319 = vsub.f32 %v309, %v315
      %v320 = vsub.f32 %v310, %v316
      %v321 = vsub.f32 %v311, %v317
      %v322 = vsub.f32 %v312, %v318
      %v323 = vand.u32 2147483647, %v158
      %v324 = vand.u32 2147483647, %v159
      %v325 = vand.u32 2147483647, %v160
      %v326 = vand.u32 2147483647, %v161
      %v327 = vsub.f32 0.0, %v323
      %v328 = vsub.f32 0.0, %v324
      %v329 = vsub.f32 0.0, %v325
      %v330 = vsub.f32 0.0, %v326
      %v331 = vmul.f32 %v327, 1.442695
      %v332 = vpow.pop %v331
      %v333 = vmul.f32 %v328, 1.442695
      %v334 = vpow.pop %v333
      %v335 = vmul.f32 %v329, 1.442695
      %v336 = vpow.pop %v335
      %v337 = vmul.f32 %v330, 1.442695
      %v338 = vpow.pop %v337
      %v339 = vadd.f32 %v332, 1.0
      %v340 = vadd.f32 %v334, 1.0
      %v341 = vadd.f32 %v336, 1.0
      %v342 = vadd.f32 %v338, 1.0
      %v343 = vlog2.pop %v339
      %v344 = vmul.f32 %v343, 0.6931472
      %v345 = vlog2.pop %v340
      %v346 = vmul.f32 %v345, 0.6931472
      %v347 = vlog2.pop %v341
      %v348 = vmul.f32 %v347, 0.6931472
      %v349 = vlog2.pop %v342
      %v350 = vmul.f32 %v349, 0.6931472
      %v351 = vadd.f32 %v319, %v344
      %v352 = vadd.f32 %v320, %v346
      %v353 = vadd.f32 %v321, %v348
      %v354 = vadd.f32 %v322, %v350
      %v359 = vrot.slane %v351, 6
      %v360 = vrot.slane %v353, 6
      %v361 = vsel %vm290, %v359, %v360
      %v362 = vrot.slane %v352, 6
      %v363 = vrot.slane %v354, 6
      %v364 = vsel %vm290, %v362, %v363
      %vm367 = vcmask 1044480
      %v368 = vsel %vm367, %v361, 0.0
      %v369 = vrot.slane %v368, 4
      %v370 = vadd.f32 %v368, %v369
      %v371 = vrot.slane %v370, 2
      %v372 = vadd.f32 %v370, %v371
      %v373 = vrot.slane %v372, 1
      %v374 = vadd.f32 %v372, %v373
      %v375 = vsel %vm367, %v364, 0.0
      %v376 = vrot.slane %v375, 4
      %v377 = vadd.f32 %v375, %v376
      %v378 = vrot.slane %v377, 2
      %v379 = vadd.f32 %v377, %v378
      %v380 = vrot.slane %v379, 1
      %v381 = vadd.f32 %v379, %v380
      %v382 = vmul.f32 %v374, %v178
      %v383 = vmul.f32 %v381, %v179
      %vm384 = vcmask 1044483
      %v385 = vsel %vm384, %v160, -inf
      %v386 = vrot.slane %v385, 4
      %v387 = vmax.f32 %v385, %v386
      %v388 = vrot.slane %v387, 2
      %v389 = vmax.f32 %v387, %v388
      %v390 = vrot.slane %v389, 1
      %v391 = vmax.f32 %v389, %v390
      %v392 = vsel %vm384, %v161, -inf
      %v393 = vrot.slane %v392, 4
      %v394 = vmax.f32 %v392, %v393
      %v395 = vrot.slane %v394, 2
      %v396 = vmax.f32 %v394, %v395
      %v397 = vrot.slane %v396, 1
      %v398 = vmax.f32 %v396, %v397
      %v399 = vsub.f32 %v160, %v391
      %v400 = vsub.f32 %v161, %v398
      %v401 = vmul.f32 %v399, 1.442695
      %v402 = vpow.pop %v401
      %v403 = vmul.f32 %v400, 1.442695
      %v404 = vpow.pop %v403
      %v407 = vrot.slane %v402, 3
      %v408 = vrot.slane %v404, 3
      %v411 = vsel %vm290, %v407, 0.0
      %v412 = vrot.slane %v411, 4
      %v413 = vadd.f32 %v411, %v412
      %v414 = vrot.slane %v413, 2
      %v415 = vadd.f32 %v413, %v414
      %v416 = vrot.slane %v415, 1
      %v417 = vadd.f32 %v415, %v416
      %v418 = vsel %vm290, %v408, 0.0
      %v419 = vrot.slane %v418, 4
      %v420 = vadd.f32 %v418, %v419
      %v421 = vrot.slane %v420, 2
      %v422 = vadd.f32 %v420, %v421
      %v423 = vrot.slane %v422, 1
      %v424 = vadd.f32 %v422, %v423
      %v425 = vlog2.pop %v417
      %v426 = vmul.f32 %v425, 0.6931472
      %v427 = vlog2.pop %v424
      %v428 = vmul.f32 %v427, 0.6931472
      %v429 = vadd.f32 %v426, %v391
      %v430 = vadd.f32 %v428, %v398
      %v431 = vrot.slane %v160, 4
      %v432 = vrot.slane %v161, 4
      %v435 = vrot.slane %v160, 3
      %v436 = vrot.slane %v161, 3
      %v439 = vsel %vm168, %v431, %v435
      %v440 = vsel %vm169, %v432, %v436
      %v441 = vsub.f32 %v429, %v439
      %v442 = vsub.f32 %v430, %v440
      %v443 = vsel %vm168, 0.0, %v441
      %v444 = vsel %vm169, 0.0, %v442
      %v447 = vcombine.low %v441, %v442
      %v449 = vunpack.c.l.s4 1966171168
      %v450 = vunpack.c.0.s8 %v449
      %v451 = vlaneseq
      %v452 = vshrl.u32 %v451, 7
      %v453 = vsub.s32 %v450, %v452
      %v454 = vrot.slane %v447, %v453
      %v456 = vunpack.c.l.s4 1966171168
      %v457 = vunpack.c.0.s8 %v456
      %v458 = vlaneseq
      %v459 = vshrl.u32 %v458, 7
      %v460 = vsub.s32 %v457, %v459
      %v461 = vrot.slane %v454, %v460
      %v463 = vlaneseq
      %vm464 = vcmp.ge.s32.totalorder %v463, 0
      %vm465 = vcmp.lt.s32.totalorder %v463, 256
      %vm466 = vmand %vm464, %vm465
      %467 = vst.msk [vmem:[%s154] ss:$8 sm:$0x3] %vm466, %v461
      %468 = vst.msk [vmem:[%s154] ss:$8 sm:$0x0] %vm466, %v461
      %v471 = vcombine.low %v443, %v444
      %v473 = vunpack.c.l.s4 1966171168
      %v474 = vunpack.c.0.s8 %v473
      %v475 = vlaneseq
      %v476 = vshrl.u32 %v475, 7
      %v477 = vsub.s32 %v474, %v476
      %v478 = vrot.slane %v471, %v477
      %v480 = vunpack.c.l.s4 1966171168
      %v481 = vunpack.c.0.s8 %v480
      %v482 = vlaneseq
      %v483 = vshrl.u32 %v482, 7
      %v484 = vsub.s32 %v481, %v483
      %v485 = vrot.slane %v478, %v484
      %s487 = scalar_lea.vmem %s154, 1
      %488 = vst.msk [vmem:[%s487] ss:$8 sm:$0x3] %vm466, %v485
      %489 = vst.msk [vmem:[%s487] ss:$8 sm:$0x0] %vm466, %v485
      %v492 = vcombine.low %v307, %v308
      %v494 = vunpack.c.l.s4 1966171168
      %v495 = vunpack.c.0.s8 %v494
      %v496 = vlaneseq
      %v497 = vshrl.u32 %v496, 7
      %v498 = vsub.s32 %v495, %v497
      %v499 = vrot.slane %v492, %v498
      %v501 = vunpack.c.l.s4 1966171168
      %v502 = vunpack.c.0.s8 %v501
      %v503 = vlaneseq
      %v504 = vshrl.u32 %v503, 7
      %v505 = vsub.s32 %v502, %v504
      %v506 = vrot.slane %v499, %v505
      %s508 = scalar_lea.vmem %s154, 2
      %509 = vst.msk [vmem:[%s508] ss:$8 sm:$0x3] %vm466, %v506
      %510 = vst.msk [vmem:[%s508] ss:$8 sm:$0x0] %vm466, %v506
      %v513 = vcombine.low %v244, %v245
      %v515 = vunpack.c.l.s4 1966171168
      %v516 = vunpack.c.0.s8 %v515
      %v517 = vlaneseq
      %v518 = vshrl.u32 %v517, 7
      %v519 = vsub.s32 %v516, %v518
      %v520 = vrot.slane %v513, %v519
      %v522 = vunpack.c.l.s4 1966171168
      %v523 = vunpack.c.0.s8 %v522
      %v524 = vlaneseq
      %v525 = vshrl.u32 %v524, 7
      %v526 = vsub.s32 %v523, %v525
      %v527 = vrot.slane %v520, %v526
      %s529 = scalar_lea.vmem %s154, 3
      %530 = vst.msk [vmem:[%s529] ss:$8 sm:$0x3] %vm466, %v527
      %531 = vst.msk [vmem:[%s529] ss:$8 sm:$0x0] %vm466, %v527
      %v534 = vcombine.low %v382, %v383
      %v536 = vunpack.c.l.s4 1966171168
      %v537 = vunpack.c.0.s8 %v536
      %v538 = vlaneseq
      %v539 = vshrl.u32 %v538, 7
      %v540 = vsub.s32 %v537, %v539
      %v541 = vrot.slane %v534, %v540
      %v543 = vunpack.c.l.s4 1966171168
      %v544 = vunpack.c.0.s8 %v543
      %v545 = vlaneseq
      %v546 = vshrl.u32 %v545, 7
      %v547 = vsub.s32 %v544, %v546
      %v548 = vrot.slane %v541, %v547
      %s550 = scalar_lea.vmem %s154, 4
      %551 = vst.msk [vmem:[%s550] ss:$8 sm:$0x3] %vm466, %v548
      %552 = vst.msk [vmem:[%s550] ss:$8 sm:$0x0] %vm466, %v548
      %553 = vst [vmem:[%s154] sm:$0xe0] 0.0
      %554 = vst [vmem:[%s154 + $0x8] sm:$0xe0] 0.0
      %s555 = smul.u32 2, %s17
      %p556 = scmp.lt.s32.totalorder %s16, 1
      %s557 = scalar_select %p556, %s16, 1
      %p558 = scmp.lt.s32.totalorder %s555, 1
      %s559 = scalar_select %p558, %s555, 1
      %s560 = smul.addr %s557, 2
      %s561 = sadd.s32 %s559, %s560
      %s562 = smul.addr %s561, 8
      %s563 = scalar_lea.vmem %s1, %s562
      // Predicated region
      $region25: #{multibox_loss_forward.1} parent=23 // pred_check
        %p564 = pneg %p72
      $region26: #{multibox_loss_forward.1} parent=23 // pred_check_branch
        %566 = sbr.rel (%p564) target = $region28
      $region27: #{multibox_loss_forward.1} parent=23 // pred_region
        %s567 = smul.u32 2, %s17
      $region28: #{multibox_loss_forward.1} parent=23 // pred_fallthru
        _
    $region24: #{multibox_loss_forward.1} parent=5 // pred_fallthru
      _
    %p568 = scmp.le.s32.totalorder 2, %s7
    // Predicated region
    $region29: #{multibox_loss_forward.1} parent=5 // pred_check
      %p569 = pneg %p568
    $region30: #{multibox_loss_forward.1} parent=5 // pred_check_branch
      %571 = sbr.rel (%p569) target = $region32
    $region31: #{multibox_loss_forward.1} parent=5 // pred_region
      %s572 = ssub.s32 %s7, 2
      // Predicated region
      $region33: #{multibox_loss_forward.1} parent=31 // pred_check
        %p573 = pneg %p78
      $region34: #{multibox_loss_forward.1} parent=31 // pred_check_branch
        %575 = sbr.rel (%p573) target = $region36
      $region35: #{multibox_loss_forward.1} parent=31 // pred_region
        %s576 = smul.u32 2, %s19
        %p577 = scmp.lt.s32.totalorder %s18, 1
        %s578 = scalar_select %p577, %s18, 1
        %p579 = scmp.lt.s32.totalorder %s576, 1
        %s580 = scalar_select %p579, %s576, 1
        %s581 = smul.addr %s578, 2
        %s582 = sadd.s32 %s580, %s581
        %s583 = smul.addr %s582, 8
        %s584 = scalar_lea.vmem %s1, %s583
      $region36: #{multibox_loss_forward.1} parent=31 // pred_fallthru
        _
    $region32: #{multibox_loss_forward.1} parent=5 // pred_fallthru
      _
  $region6: #{multibox_loss_forward.1} parent=0 // loop_footer
    %s11 = sadd.s32 1, %s7
  $region7: #{multibox_loss_forward.1} parent=0 // loop_footer_branch
    %6 = sbr.rel target = $region3
  $region8: #{multibox_loss_forward.1} parent=0 // loop_exit
    _

</llo_original>
